<compile_context>
chip_gen: v7x
topology: tpu7x:2x2x1
jax: 0.10.0
libtpu: 0.0.40
codegen_flags: <defaults>
</compile_context>

<pallas_src>
import jax
import jax.numpy as jnp
from jax.experimental import pallas as pl
from jax.experimental.pallas import tpu as pltpu


def _point_decoder_kernel(x_ref, w0_ref, b0_ref, w1_ref, b1_ref, o_ref, h_ref):
    # x_ref:  [B_pad, 512]  (bf16, resident)   w0_ref: [512, n_points] (bf16, resident)
    # b0_ref: [1, n_points] (f32, resident)
    # w1_ref: [n_points, TN] (bf16, streamed)  b1_ref: [1, TN] (f32, streamed)
    # o_ref:  [B_pad, TN]   (f32)              h_ref:  [B_pad, n_points] scratch

    # Hidden layer is computed once per core-split (the inner grid axis runs
    # sequentially per core, starting at j == 0) and cached in VMEM scratch.
    @pl.when(pl.program_id(1) == 0)
    def _():
        h = jnp.dot(x_ref[...], w0_ref[...], preferred_element_type=jnp.float32)
        h = h + b0_ref[...]
        h = jnp.where(h > 0, h, 0.01 * h)            # LeakyReLU(negative_slope=0.01)
        h_ref[...] = h.astype(h_ref.dtype)

    # One output tile of the second layer: Tanh(h @ W1[:, tile] + b1[tile]).
    y = jnp.dot(h_ref[...], w1_ref[...], preferred_element_type=jnp.float32)
    y = y + b1_ref[...]
    o_ref[...] = jnp.tanh(y).astype(o_ref.dtype)


def single_view_to_3d_point(encoded_feat, w0, b0, w1, b1, n_points, *,
                            tile_n=512, weight_dtype=jnp.bfloat16):
    """Pallas forward for the 'point' branch of SingleViewto3D.

    encoded_feat: [B, 512] float32   (args.load_feat == True path)
    w0: [512, n_points], b0: [1, n_points]
    w1: [n_points, 3*n_points], b1: [1, 3*n_points]   (transposed vs PyTorch)
    returns: [B, n_points, 3] float32
    """
    B, F = encoded_feat.shape
    assert F == 512
    out_dim = 3 * n_points
    assert w0.shape == (F, n_points) and w1.shape == (n_points, out_dim)

    # Batch padded to a full sublane row -> unmasked vector stores.
    B_pad = max(8, -(-B // 8) * 8)

    # Output tiling: TN is a multiple of 128; pad out_dim so every tile is full
    # (no masked vst.msk stores, no OOB on the last tile).
    tile_n = max(128, (int(tile_n) // 128) * 128)
    TN = min(tile_n, -(-out_dim // 128) * 128)
    num_tiles = -(-out_dim // TN)
    num_splits = 2 if num_tiles >= 2 else 1          # feeds v7x's two TensorCores
    tiles_per_split = -(-num_tiles // num_splits)
    out_pad = num_splits * tiles_per_split * TN

    f32 = jnp.float32
    x_p = jnp.zeros((B_pad, F), weight_dtype).at[:B, :].set(
        encoded_feat.astype(weight_dtype))
    w0_c = w0.astype(weight_dtype)
    b0_c = b0.reshape(1, n_points).astype(f32)
    w1_c = jnp.pad(w1, ((0, 0), (0, out_pad - out_dim))).astype(weight_dtype)
    b1_c = jnp.pad(b1.reshape(1, out_dim),
                   ((0, 0), (0, out_pad - out_dim))).astype(f32)

    # Rough VMEM budget: resident operands + 2x double-buffered streamed tiles.
    itemsize = jnp.dtype(weight_dtype).itemsize
    resident = (B_pad * F + F * n_points + B_pad * n_points) * itemsize + n_points * 4
    per_tile = n_points * TN * itemsize + TN * 4 + B_pad * TN * 4
    vmem_limit = int(min(2 * (resident + 2 * per_tile) + (8 << 20), 64 << 20))

    def _tile_map(c, j):
        return (0, c * tiles_per_split + j)

    y = pl.pallas_call(
        _point_decoder_kernel,
        out_shape=jax.ShapeDtypeStruct((B_pad, out_pad), f32),
        grid_spec=pltpu.PrefetchScalarGridSpec(
            num_scalar_prefetch=0,
            grid=(num_splits, tiles_per_split),
            in_specs=[
                pl.BlockSpec((B_pad, F), lambda c, j: (0, 0)),     # x   (resident)
                pl.BlockSpec((F, n_points), lambda c, j: (0, 0)),  # W0  (resident)
                pl.BlockSpec((1, n_points), lambda c, j: (0, 0)),  # b0  (resident)
                pl.BlockSpec((n_points, TN), _tile_map),           # W1  (streamed)
                pl.BlockSpec((1, TN), _tile_map),                  # b1  (streamed)
            ],
            out_specs=pl.BlockSpec((B_pad, TN), _tile_map),
            scratch_shapes=[pltpu.VMEM((B_pad, n_points), weight_dtype)],
        ),
        compiler_params=pltpu.CompilerParams(
            dimension_semantics=("parallel", "arbitrary"),
            vmem_limit_bytes=vmem_limit,
        ),
    )(x_p, w0_c, b0_c, w1_c, b1_c)

    # glue: drop padding, .view(-1, n_points, 3)
    return y[:B, :out_dim].reshape(B, n_points, 3)


def _reference_f32(encoded_feat, w0, b0, w1, b1, n_points):
    h = encoded_feat @ w0 + b0
    h = jnp.where(h > 0, h, 0.01 * h)
    y = jnp.tanh(h @ w1 + b1)
    return y.reshape(encoded_feat.shape[0], n_points, 3)


def _reference_bf16(encoded_feat, w0, b0, w1, b1, n_points):
    # Matches the kernel's bf16-operand / f32-accumulate arithmetic.
    f32 = jnp.float32
    hp = jax.lax.Precision.HIGHEST
    xb = encoded_feat.astype(jnp.bfloat16).astype(f32)
    w0b = w0.astype(jnp.bfloat16).astype(f32)
    w1b = w1.astype(jnp.bfloat16).astype(f32)
    h = jnp.dot(xb, w0b, precision=hp) + b0
    h = jnp.where(h > 0, h, 0.01 * h)
    h = h.astype(jnp.bfloat16).astype(f32)
    y = jnp.tanh(jnp.dot(h, w1b, precision=hp) + b1)
    return y.reshape(encoded_feat.shape[0], n_points, 3)


if __name__ == "__main__":
    # Small shapes consistent with the module: first Linear is hardcoded
    # Linear(512, n_points), so the feature dim stays 512.
    B = 2
    F = 512
    n_points = 128  # args.n_points

    key = jax.random.PRNGKey(0)
    k_x, k_w0, k_b0, k_w1, k_b1 = jax.random.split(key, 5)

    encoded_feat = jax.random.normal(k_x, (B, F), dtype=jnp.float32)
    w0 = jax.random.normal(k_w0, (F, n_points), dtype=jnp.float32) * 0.05
    b0 = jax.random.normal(k_b0, (1, n_points), dtype=jnp.float32) * 0.05
    w1 = jax.random.normal(k_w1, (n_points, 3 * n_points), dtype=jnp.float32) * 0.05
    b1 = jax.random.normal(k_b1, (1, 3 * n_points), dtype=jnp.float32) * 0.05

    # tile_n=128 at this toy size exercises multi-tile streaming, the 2-way
    # core split, and the out_dim padding path (384 -> 512).
    pointclouds_pred = single_view_to_3d_point(
        encoded_feat, w0, b0, w1, b1, n_points, tile_n=128)
    pointclouds_pred = jax.block_until_ready(pointclouds_pred)

    ref_bf16 = _reference_bf16(encoded_feat, w0, b0, w1, b1, n_points)
    ref_f32 = _reference_f32(encoded_feat, w0, b0, w1, b1, n_points)

    assert pointclouds_pred.shape == (B, n_points, 3)
    # Tight check vs a reference that mirrors the kernel's bf16/f32 arithmetic.
    assert jnp.allclose(pointclouds_pred, ref_bf16, atol=5e-3, rtol=5e-3)
    # Sanity check vs the pure-f32 PyTorch-equivalent math.
    assert jnp.allclose(pointclouds_pred, ref_f32, atol=5e-2, rtol=5e-2)

    print("KERNEL_OK")
</pallas_src>

<mosaic_0001>
module attributes {stable_mosaic.version = 11 : i64} {
  func.func @_point_decoder_kernel(%arg0: i32, %arg1: i32, %arg2: memref<8x512xbf16, #tpu.memory_space<vmem>>, %arg3: memref<512x128xbf16, #tpu.memory_space<vmem>>, %arg4: memref<1x128xf32, #tpu.memory_space<vmem>>, %arg5: memref<128x128xbf16, #tpu.memory_space<vmem>>, %arg6: memref<1x128xf32, #tpu.memory_space<vmem>>, %arg7: memref<8x128xf32, #tpu.memory_space<vmem>>, %arg8: memref<8x128xbf16, #tpu.memory_space<vmem>>) attributes {dimension_semantics = [#tpu.dimension_semantics<parallel>, #tpu.dimension_semantics<arbitrary>], iteration_bounds = array<i64: 2, 2>, scalar_prefetch = 0 : i64, scratch_operands = 1 : i64, tpu.core_type = #tpu.core_type<tc>, window_params = [{pipeline_mode = #tpu.pipeline_mode<synchronous>, transform_indices = @transform_0, window_bounds = array<i64: 8, 512>}, {pipeline_mode = #tpu.pipeline_mode<synchronous>, transform_indices = @transform_1, window_bounds = array<i64: 512, 128>}, {pipeline_mode = #tpu.pipeline_mode<synchronous>, transform_indices = @transform_2, window_bounds = array<i64: 1, 128>}, {transform_indices = @transform_3, window_bounds = array<i64: 128, 128>}, {transform_indices = @transform_4, window_bounds = array<i64: 1, 128>}, {transform_indices = @transform_5, window_bounds = array<i64: 8, 128>}]} {
    %c0_i32 = arith.constant 0 : i32
    %0 = arith.cmpi eq, %arg1, %c0_i32 : i32
    %1 = arith.extui %0 : i1 to i32
    %c0_i32_0 = arith.constant 0 : i32
    %2 = arith.cmpi ne, %1, %c0_i32_0 : i32
    scf.if %2 {
      %c0_8 = arith.constant 0 : index
      %c0_9 = arith.constant 0 : index
      %11 = vector.load %arg2[%c0_8, %c0_9] : memref<8x512xbf16, #tpu.memory_space<vmem>>, vector<8x512xbf16>
      %c0_10 = arith.constant 0 : index
      %c0_11 = arith.constant 0 : index
      %12 = vector.load %arg3[%c0_10, %c0_11] : memref<512x128xbf16, #tpu.memory_space<vmem>>, vector<512x128xbf16>
      %cst_12 = arith.constant dense<0.000000e+00> : vector<8x128xf32>
      %13 = tpu.matmul %11, %12, %cst_12 {dimension_numbers = #tpu.dot_dimension_numbers<[1], [0], [0], [1], [0, 0, 1, 1], [], []>} : vector<8x512xbf16>, vector<512x128xbf16>, vector<8x128xf32> -> vector<8x128xf32>
      %c0_13 = arith.constant 0 : index
      %c0_14 = arith.constant 0 : index
      %14 = vector.load %arg4[%c0_13, %c0_14] : memref<1x128xf32, #tpu.memory_space<vmem>>, vector<1x128xf32>
      %15 = vector.broadcast %14 : vector<1x128xf32> to vector<8x128xf32>
      %16 = arith.addf %13, %15 : vector<8x128xf32>
      %cst_15 = arith.constant 0.000000e+00 : f32
      %17 = vector.broadcast %cst_15 : f32 to vector<8x128xf32>
      %18 = arith.cmpf ogt, %16, %17 : vector<8x128xf32>
      %cst_16 = arith.constant 0.00999999977 : f32
      %19 = vector.broadcast %cst_16 : f32 to vector<8x128xf32>
      %20 = arith.mulf %19, %16 : vector<8x128xf32>
      %21 = arith.select %18, %16, %20 : vector<8x128xi1>, vector<8x128xf32>
      %22 = arith.truncf %21 : vector<8x128xf32> to vector<8x128xbf16>
      %c0_17 = arith.constant 0 : index
      %c0_18 = arith.constant 0 : index
      %23 = vector.load %arg8[%c0_17, %c0_18] : memref<8x128xbf16, #tpu.memory_space<vmem>>, vector<8x128xbf16>
      tpu.vector_store %arg8[%c0_17, %c0_18], %22 {strides = array<i32>} : memref<8x128xbf16, #tpu.memory_space<vmem>>, vector<8x128xbf16>,
    } else {
    }
    %c0 = arith.constant 0 : index
    %c0_1 = arith.constant 0 : index
    %3 = vector.load %arg8[%c0, %c0_1] : memref<8x128xbf16, #tpu.memory_space<vmem>>, vector<8x128xbf16>
    %c0_2 = arith.constant 0 : index
    %c0_3 = arith.constant 0 : index
    %4 = vector.load %arg5[%c0_2, %c0_3] : memref<128x128xbf16, #tpu.memory_space<vmem>>, vector<128x128xbf16>
    %cst = arith.constant dense<0.000000e+00> : vector<8x128xf32>
    %5 = tpu.matmul %3, %4, %cst {dimension_numbers = #tpu.dot_dimension_numbers<[1], [0], [0], [1], [0, 0, 1, 1], [], []>} : vector<8x128xbf16>, vector<128x128xbf16>, vector<8x128xf32> -> vector<8x128xf32>
    %c0_4 = arith.constant 0 : index
    %c0_5 = arith.constant 0 : index
    %6 = vector.load %arg6[%c0_4, %c0_5] : memref<1x128xf32, #tpu.memory_space<vmem>>, vector<1x128xf32>
    %7 = vector.broadcast %6 : vector<1x128xf32> to vector<8x128xf32>
    %8 = arith.addf %5, %7 : vector<8x128xf32>
    %9 = math.tanh %8 : vector<8x128xf32>
    %c0_6 = arith.constant 0 : index
    %c0_7 = arith.constant 0 : index
    %10 = vector.load %arg7[%c0_6, %c0_7] : memref<8x128xf32, #tpu.memory_space<vmem>>, vector<8x128xf32>
    tpu.vector_store %arg7[%c0_6, %c0_7], %9 {strides = array<i32>} : memref<8x128xf32, #tpu.memory_space<vmem>>, vector<8x128xf32>,
    return
  }
  func.func @transform_0(%arg0: i32, %arg1: i32) -> (i32, i32) {
    %c0_i32 = arith.constant 0 : i32
    %c0_i32_0 = arith.constant 0 : i32
    %c0_i32_1 = arith.constant 0 : i32
    return %c0_i32, %c0_i32_0 : i32, i32
  }
  func.func @transform_1(%arg0: i32, %arg1: i32) -> (i32, i32) {
    %c0_i32 = arith.constant 0 : i32
    %c0_i32_0 = arith.constant 0 : i32
    %c0_i32_1 = arith.constant 0 : i32
    return %c0_i32, %c0_i32_0 : i32, i32
  }
  func.func @transform_2(%arg0: i32, %arg1: i32) -> (i32, i32) {
    %c0_i32 = arith.constant 0 : i32
    %c0_i32_0 = arith.constant 0 : i32
    %c0_i32_1 = arith.constant 0 : i32
    return %c0_i32, %c0_i32_0 : i32, i32
  }
  func.func @transform_3(%arg0: i32, %arg1: i32) -> (i32, i32) {
    %c2_i32 = arith.constant 2 : i32
    %0 = arith.muli %arg0, %c2_i32 : i32
    %1 = arith.addi %0, %arg1 : i32
    %c0_i32 = arith.constant 0 : i32
    %c0_i32_0 = arith.constant 0 : i32
    return %c0_i32, %1 : i32, i32
  }
  func.func @transform_4(%arg0: i32, %arg1: i32) -> (i32, i32) {
    %c2_i32 = arith.constant 2 : i32
    %0 = arith.muli %arg0, %c2_i32 : i32
    %1 = arith.addi %0, %arg1 : i32
    %c0_i32 = arith.constant 0 : i32
    %c0_i32_0 = arith.constant 0 : i32
    return %c0_i32, %1 : i32, i32
  }
  func.func @transform_5(%arg0: i32, %arg1: i32) -> (i32, i32) {
    %c2_i32 = arith.constant 2 : i32
    %0 = arith.muli %arg0, %c2_i32 : i32
    %1 = arith.addi %0, %arg1 : i32
    %c0_i32 = arith.constant 0 : i32
    %c0_i32_0 = arith.constant 0 : i32
    return %c0_i32, %1 : i32, i32
  }
}

</mosaic_0001>

<llo_original>
// kernel: tpu_custom_call.1
$region0: #{tpu_custom_call.1}
  #allocation0 [shape = 'u32[]', space=smem, size = 0x4, offset = 0x4, fixed_abs, tag = 'smem constant byte address 0x4 - core index']
  #allocation1 [shape = 'u32[144,128]{1,0:T(1,128)}', space=vmem, size = 0x12000, scoped, tag = 'internal scratch']
  #allocation2 [shape = 'bf16[8,128]{1,0:T(8,128)(2,1)}', space=vmem, size = 0x800, scoped, tag = 'scratch operand']
  %s0 = inlined_call_operand.hbm [shape: bf16[8,512], index: 0, kind: input, shape index: {}]
  %s1 = inlined_call_operand.hbm [shape: bf16[512,128], index: 1, kind: input, shape index: {}]
  %s2 = inlined_call_operand.vmem [shape: f32[1,128], index: 2, kind: input, shape index: {}]
  %s3 = inlined_call_operand.hbm [shape: bf16[128,512], index: 3, kind: input, shape index: {}]
  %s4 = inlined_call_operand.vmem [shape: f32[1,512], index: 4, kind: input, shape index: {}]
  %s5 = inlined_call_operand.hbm [shape: f32[8,512], index: 5, kind: output, shape index: {}]
  %s6 = sld [smem:[#allocation0]]
  $region69: #{tpu_custom_call.1} parent=0
    _
  %s8 = ssub.s32 1, %s6
  %s9 = scalar_select 0, %s8, %s6
  $region1: #{tpu_custom_call.1} parent=0
    #allocation3 [shape = 'u8[8192]{0}', space=vmem, size = 0x2000, scoped, tag = 'input window, operand 0, single buffered']
    #allocation4 [shape = 's32[2]{0}', space=sflag, size = 0x8, scoped, tag = 'scoped memory for tpu_custom_call.1']
    #allocation5 [shape = 's32[2]{0}', space=sflag, size = 0x8, scoped, tag = 'scoped memory for tpu_custom_call.1']
    #allocation6 [shape = 'u8[131072]{0}', space=vmem, size = 0x20000, scoped, tag = 'input window, operand 1, single buffered']
    #allocation7 [shape = 's32[1]{0}', space=sflag, size = 0x4, scoped, tag = 'scoped memory for tpu_custom_call.1']
    #allocation8 [shape = 'u8[65536]{0}', space=vmem, size = 0x10000, scoped, tag = 'input window, operand 3']
    #allocation9 [shape = 'u8[8192]{0}', space=vmem, size = 0x2000, scoped, tag = 'output window, operand 0']
    %10 = vsyncpa [#allocation4], 0
    %11 = vsyncpa [#allocation7], 0
    %12 = vsyncpa [#allocation5], 0
    %s13 = scalar_lea.sflag [#allocation5], 1
    %14 = vsyncpa %s13, 0
    loop: start=0, step=1, limit=6
    $region2: #{tpu_custom_call.1} parent=1 // loop_pre_header
      _
    $region3: #{tpu_custom_call.1} parent=1 // loop_header
      %s16 = sphi 0, %s20
      %p17 = scmp.ge.s32.totalorder %s16, 6
      %s23 = sphi 0, %s35
      %s24 = sphi 0, %s31
      %s25 = sphi 0, %s23
      %s26 = sphi 0, %s24
      %s27 = sphi 0, %s25
      %s28 = sphi 0, %s26
      %s36 = sphi 0, %s36
      %s38 = sphi 0, %s36
      %s39 = sphi 0, %s38
      %s53 = sphi 0, %s39
      %s57 = sphi 0, %s57
      %s59 = sphi 0, %s57
      %s60 = sphi 0, %s59
      %s74 = sphi 0, %s60
      %s78 = sphi 0, %s78
      %s80 = sphi 0, %s78
      %s81 = sphi 0, %s80
      %s95 = sphi 0, %s81
      %s105 = sphi 0, %s107
      %s108 = sphi 0, %s105
      %s109 = sphi 0, %s108
      %s125 = sphi 0, %s109
      %s135 = sphi 0, %s137
      %s138 = sphi 0, %s135
      %s139 = sphi 0, %s138
      %s155 = sphi 0, %s139
      %s165 = sphi 0, %s167
      %s168 = sphi 0, %s165
      %s169 = sphi 0, %s168
      %s185 = sphi 0, %s169
    $region4: #{tpu_custom_call.1} parent=1 // loop_header_branch
      %19 = sbr.rel (%p17) target = $region8
    $region5: #{tpu_custom_call.1} parent=1 // loop_body
      %s21 = ssub.s32 %s16, 1
      %s22 = ssub.s32 %s16, 2
      %s29 = sadd.s32 1, %s24
      %p30 = scmp.ge.s32.totalorder %s29, 2
      %s31 = scalar_select %p30, 0, %s29
      %s32 = sadd.s32 1, %s23
      %s33 = scalar_select %p30, %s32, %s23
      %p34 = scmp.ge.s32.totalorder %s33, 2
      %s35 = scalar_select %p34, 0, %s33
      %s37 = sadd.s32 %s36, 1
      %p40 = scmp.eq.s32.totalorder %s16, 3
      %p41 = scmp.ne.s32.totalorder %s36, %s38
      %p42 = scmp.eq.s32.totalorder %s16, 0
      %p43 = por %p41, %p42
      %p44 = scmp.ne.s32.totalorder %s36, %s38
      %p45 = scmp.eq.s32.totalorder %s21, 3
      %p46 = por %p44, %p45
      %p47 = scmp.ne.s32.totalorder %s38, %s39
      %p48 = scmp.eq.s32.totalorder %s21, 0
      %p49 = por %p47, %p48
      %p50 = scmp.ne.s32.totalorder %s38, %s39
      %p51 = scmp.eq.s32.totalorder %s22, 3
      %p52 = por %p50, %p51
      %p54 = scmp.ne.s32.totalorder %s39, %s53
      %p55 = scmp.eq.s32.totalorder %s22, 0
      %p56 = por %p54, %p55
      %s58 = sadd.s32 %s57, 1
      %p61 = scmp.eq.s32.totalorder %s16, 3
      %p62 = scmp.ne.s32.totalorder %s57, %s59
      %p63 = scmp.eq.s32.totalorder %s16, 0
      %p64 = por %p62, %p63
      %p65 = scmp.ne.s32.totalorder %s57, %s59
      %p66 = scmp.eq.s32.totalorder %s21, 3
      %p67 = por %p65, %p66
      %p68 = scmp.ne.s32.totalorder %s59, %s60
      %p69 = scmp.eq.s32.totalorder %s21, 0
      %p70 = por %p68, %p69
      %p71 = scmp.ne.s32.totalorder %s59, %s60
      %p72 = scmp.eq.s32.totalorder %s22, 3
      %p73 = por %p71, %p72
      %p75 = scmp.ne.s32.totalorder %s60, %s74
      %p76 = scmp.eq.s32.totalorder %s22, 0
      %p77 = por %p75, %p76
      %s79 = sadd.s32 %s78, 1
      %p82 = scmp.eq.s32.totalorder %s16, 3
      %p83 = scmp.ne.s32.totalorder %s78, %s80
      %p84 = scmp.eq.s32.totalorder %s16, 0
      %p85 = por %p83, %p84
      %p86 = scmp.ne.s32.totalorder %s78, %s80
      %p87 = scmp.eq.s32.totalorder %s21, 3
      %p88 = por %p86, %p87
      %p89 = scmp.ne.s32.totalorder %s80, %s81
      %p90 = scmp.eq.s32.totalorder %s21, 0
      %p91 = por %p89, %p90
      %p92 = scmp.ne.s32.totalorder %s80, %s81
      %p93 = scmp.eq.s32.totalorder %s22, 3
      %p94 = por %p92, %p93
      %p96 = scmp.ne.s32.totalorder %s81, %s95
      %p97 = scmp.eq.s32.totalorder %s22, 0
      %p98 = por %p96, %p97
      %s99 = smul.u32 %s23, 2
      %s100 = sadd.s32 %s99, %s24
      %s101 = smul.u32 %s35, 2
      %s102 = sadd.s32 %s101, %s31
      %s103 = ssub.s32 %s100, %s102
      %p104 = scmp.eq.s32.totalorder %s103, 0
      %s106 = sadd.s32 %s105, 1
      %s107 = scalar_select %p104, %s105, %s106
      %p110 = pneg %p104
      %p111 = scmp.eq.s32.totalorder %s16, 3
      %p112 = por %p110, %p111
      %p113 = scmp.ne.s32.totalorder %s105, %s108
      %p114 = scmp.eq.s32.totalorder %s16, 0
      %p115 = por %p113, %p114
      %p116 = scmp.ne.s32.totalorder %s105, %s108
      %p117 = scmp.eq.s32.totalorder %s21, 3
      %p118 = por %p116, %p117
      %p119 = scmp.ne.s32.totalorder %s108, %s109
      %p120 = scmp.eq.s32.totalorder %s21, 0
      %p121 = por %p119, %p120
      %p122 = scmp.ne.s32.totalorder %s108, %s109
      %p123 = scmp.eq.s32.totalorder %s22, 3
      %p124 = por %p122, %p123
      %p126 = scmp.ne.s32.totalorder %s109, %s125
      %p127 = scmp.eq.s32.totalorder %s22, 0
      %p128 = por %p126, %p127
      %s129 = smul.u32 %s23, 2
      %s130 = sadd.s32 %s129, %s24
      %s131 = smul.u32 %s35, 2
      %s132 = sadd.s32 %s131, %s31
      %s133 = ssub.s32 %s130, %s132
      %p134 = scmp.eq.s32.totalorder %s133, 0
      %s136 = sadd.s32 %s135, 1
      %s137 = scalar_select %p134, %s135, %s136
      %p140 = pneg %p134
      %p141 = scmp.eq.s32.totalorder %s16, 3
      %p142 = por %p140, %p141
      %p143 = scmp.ne.s32.totalorder %s135, %s138
      %p144 = scmp.eq.s32.totalorder %s16, 0
      %p145 = por %p143, %p144
      %p146 = scmp.ne.s32.totalorder %s135, %s138
      %p147 = scmp.eq.s32.totalorder %s21, 3
      %p148 = por %p146, %p147
      %p149 = scmp.ne.s32.totalorder %s138, %s139
      %p150 = scmp.eq.s32.totalorder %s21, 0
      %p151 = por %p149, %p150
      %p152 = scmp.ne.s32.totalorder %s138, %s139
      %p153 = scmp.eq.s32.totalorder %s22, 3
      %p154 = por %p152, %p153
      %p156 = scmp.ne.s32.totalorder %s139, %s155
      %p157 = scmp.eq.s32.totalorder %s22, 0
      %p158 = por %p156, %p157
      %s159 = smul.u32 %s23, 2
      %s160 = sadd.s32 %s159, %s24
      %s161 = smul.u32 %s35, 2
      %s162 = sadd.s32 %s161, %s31
      %s163 = ssub.s32 %s160, %s162
      %p164 = scmp.eq.s32.totalorder %s163, 0
      %s166 = sadd.s32 %s165, 1
      %s167 = scalar_select %p164, %s165, %s166
      %p170 = pneg %p164
      %p171 = scmp.eq.s32.totalorder %s16, 3
      %p172 = por %p170, %p171
      %p173 = scmp.ne.s32.totalorder %s165, %s168
      %p174 = scmp.eq.s32.totalorder %s16, 0
      %p175 = por %p173, %p174
      %p176 = scmp.ne.s32.totalorder %s165, %s168
      %p177 = scmp.eq.s32.totalorder %s21, 3
      %p178 = por %p176, %p177
      %p179 = scmp.ne.s32.totalorder %s168, %s169
      %p180 = scmp.eq.s32.totalorder %s21, 0
      %p181 = por %p179, %p180
      %p182 = scmp.ne.s32.totalorder %s168, %s169
      %p183 = scmp.eq.s32.totalorder %s22, 3
      %p184 = por %p182, %p183
      %p186 = scmp.ne.s32.totalorder %s169, %s185
      %p187 = scmp.eq.s32.totalorder %s22, 0
      %p188 = por %p186, %p187
      %p189 = scmp.le.s32.totalorder 1, %s16
      %p190 = scmp.lt.s32.totalorder %s16, 5
      %p191 = pnand %p189, %p190
      %p192 = pneg %p191
      // Predicated region
      $region9: #{tpu_custom_call.1} parent=5 // pred_check
        _
      $region10: #{tpu_custom_call.1} parent=5 // pred_check_branch
        %194 = sbr.rel (%p191) target = $region12
      $region11: #{tpu_custom_call.1} parent=5 // pred_region
        %s195 = ssub.s32 %s16, 1
        // Predicated region
        $region13: #{tpu_custom_call.1} parent=11 // pred_check
          %p196 = pneg %p49
        $region14: #{tpu_custom_call.1} parent=11 // pred_check_branch
          %198 = sbr.rel (%p196) target = $region16
        $region15: #{tpu_custom_call.1} parent=11 // pred_region
          %s200 = ssub.s32 256, 256
          %201 = vsyncadd [#allocation4], %s200
          %s203 = sshll.u32 [#allocation3], 4
          %s204 = int_to_ptr.vmem [resolvable:$true] %s203
          %206 = dma.hbm_to_vmem [thread:$0]  %s0, 256, %s204, [#allocation4]
        $region16: #{tpu_custom_call.1} parent=11 // pred_fallthru
          _
        // Predicated region
        $region17: #{tpu_custom_call.1} parent=11 // pred_check
          %p207 = pneg %p70
        $region18: #{tpu_custom_call.1} parent=11 // pred_check_branch
          %209 = sbr.rel (%p207) target = $region20
        $region19: #{tpu_custom_call.1} parent=11 // pred_region
          %s211 = ssub.s32 4096, 4096
          %212 = vsyncadd [#allocation7], %s211
          %s213 = sshll.u32 [#allocation6], 4
          %s214 = int_to_ptr.vmem [resolvable:$true] %s213
          %219 = dma.hbm_to_vmem [thread:$0]  %s1, 4096, %s214, [#allocation7], 64, 64, 4
        $region20: #{tpu_custom_call.1} parent=11 // pred_fallthru
          _
        // Predicated region
        $region21: #{tpu_custom_call.1} parent=11 // pred_check
          %p220 = pneg %p91
        $region22: #{tpu_custom_call.1} parent=11 // pred_check_branch
          %222 = sbr.rel (%p220) target = $region24
        $region23: #{tpu_custom_call.1} parent=11 // pred_region
          _
        $region24: #{tpu_custom_call.1} parent=11 // pred_fallthru
          _
      $region12: #{tpu_custom_call.1} parent=5 // pred_fallthru
        _
      %p223 = scmp.lt.s32.totalorder %s16, 4
      // Predicated region
      $region25: #{tpu_custom_call.1} parent=5 // pred_check
        %p224 = pneg %p223
      $region26: #{tpu_custom_call.1} parent=5 // pred_check_branch
        %226 = sbr.rel (%p224) target = $region28
      $region27: #{tpu_custom_call.1} parent=5 // pred_region
        // Predicated region
        $region29: #{tpu_custom_call.1} parent=27 // pred_check
          %p227 = pneg %p115
        $region30: #{tpu_custom_call.1} parent=27 // pred_check_branch
          %229 = sbr.rel (%p227) target = $region32
        $region31: #{tpu_custom_call.1} parent=27 // pred_region
          %s230 = sand.u32 %s16, 1
          %s231 = scalar_lea.sflag [#allocation4], %s230
          %s232 = sand.u32 %s105, 1
          %s233 = smul.addr %s232, 64
          %s234 = scalar_lea.vmem [#allocation8], %s233
          %s235 = smul.u32 %s23, 2
          %s236 = sadd.s32 %s235, %s24
          %s238 = ssub.s32 1024, 1024
          %239 = vsyncadd %s231, %s238
          %s240 = smul.addr %s236, 64
          %s241 = scalar_lea.hbm %s3, %s240
          %s242 = sshll.u32 %s234, 4
          %s243 = int_to_ptr.vmem [resolvable:$true] %s242
          %248 = dma.hbm_to_vmem [thread:$0]  %s241, 1024, %s243, %s231, 256, 64, 4
        $region32: #{tpu_custom_call.1} parent=27 // pred_fallthru
          _
        // Predicated region
        $region33: #{tpu_custom_call.1} parent=27 // pred_check
          %p249 = pneg %p145
        $region34: #{tpu_custom_call.1} parent=27 // pred_check_branch
          %251 = sbr.rel (%p249) target = $region36
        $region35: #{tpu_custom_call.1} parent=27 // pred_region
          %s252 = smul.u32 %s23, 2
          %s253 = sadd.s32 %s252, %s24
          %p254 = scmp.lt.s32.totalorder %s253, 3
          %s255 = scalar_select %p254, %s253, 3
          %s256 = scalar_lea.vmem %s4, %s255
          %s257 = smul.u32 %s23, 2
          %s258 = sadd.s32 %s257, %s24
        $region36: #{tpu_custom_call.1} parent=27 // pred_fallthru
          _
      $region28: #{tpu_custom_call.1} parent=5 // pred_fallthru
        _
      %p259 = scmp.le.s32.totalorder 1, %s16
      %p260 = scmp.lt.s32.totalorder %s16, 5
      %p261 = pnand %p259, %p260
      %p262 = pneg %p261
      // Predicated region
      $region37: #{tpu_custom_call.1} parent=5 // pred_check
        _
      $region38: #{tpu_custom_call.1} parent=5 // pred_check_branch
        %264 = sbr.rel (%p261) target = $region40
      $region39: #{tpu_custom_call.1} parent=5 // pred_region
        %s265 = ssub.s32 %s16, 1
        // Predicated region
        $region41: #{tpu_custom_call.1} parent=39 // pred_check
          %p266 = pneg %p49
        $region42: #{tpu_custom_call.1} parent=39 // pred_check_branch
          %268 = sbr.rel (%p266) target = $region44
        $region43: #{tpu_custom_call.1} parent=39 // pred_region
          %269 = dma.done [#allocation4], 256
        $region44: #{tpu_custom_call.1} parent=39 // pred_fallthru
          _
        // Predicated region
        $region45: #{tpu_custom_call.1} parent=39 // pred_check
          %p270 = pneg %p70
        $region46: #{tpu_custom_call.1} parent=39 // pred_check_branch
          %272 = sbr.rel (%p270) target = $region48
        $region47: #{tpu_custom_call.1} parent=39 // pred_region
          %273 = dma.done [#allocation7], 4096
        $region48: #{tpu_custom_call.1} parent=39 // pred_fallthru
          _
        %s274 = sand.u32 %s21, 1
        %s275 = scalar_lea.sflag [#allocation4], %s274
        %s276 = sand.u32 %s108, 1
        %s277 = smul.addr %s276, 64
        %s278 = scalar_lea.vmem [#allocation8], %s277
        // Predicated region
        $region49: #{tpu_custom_call.1} parent=39 // pred_check
          %p279 = pneg %p121
        $region50: #{tpu_custom_call.1} parent=39 // pred_check_branch
          %281 = sbr.rel (%p279) target = $region52
        $region51: #{tpu_custom_call.1} parent=39 // pred_region
          %282 = dma.done %s275, 1024
        $region52: #{tpu_custom_call.1} parent=39 // pred_fallthru
          _
        %p283 = pneg %p49
        %p284 = pneg %p46
        %p285 = pneg %p70
        %p286 = pneg %p67
        %p287 = pneg %p91
        %p288 = pneg %p88
        %s289 = sand.u32 %s21, 1
        %s290 = scalar_lea.sflag [#allocation4], %s289
        %s291 = sand.u32 %s108, 1
        %s292 = smul.addr %s291, 64
        %s293 = scalar_lea.vmem [#allocation8], %s292
        %p294 = pneg %p121
        %p295 = pneg %p118
        %s296 = smul.u32 %s25, 2
        %s297 = sadd.s32 %s296, %s26
        %p298 = scmp.lt.s32.totalorder %s297, 3
        %s299 = scalar_select %p298, %s297, 3
        %s300 = scalar_lea.vmem %s4, %s299
        %p301 = pneg %p151
        %p302 = pneg %p148
        %p303 = pneg %p181
        %p304 = pneg %p178
        %s305 = sand.u32 %s168, 1
        %s306 = scalar_lea.sflag [#allocation5], %s305
        %s307 = sand.u32 %s168, 1
        %s308 = smul.addr %s307, 8
        %s309 = scalar_lea.vmem [#allocation9], %s308
        %s310 = smul.u32 %s25, 2
        %s311 = sadd.s32 %s310, %s26
        %s312 = smul.u32 %s25, 2
        %s313 = sadd.s32 %s312, %s26
        %p314 = scmp.lt.s32.totalorder %s313, 3
        %s315 = scalar_select %p314, %s313, 3
        %s316 = scalar_lea.vmem %s4, %s315
        %s317 = smul.u32 %s25, 2
        %s318 = sadd.s32 %s317, %s26
        %s319 = smul.u32 %s25, 2
        %s320 = sadd.s32 %s319, %s26
        %p322 = scmp.eq.s32.totalorder %s26, 0
        // Predicated region
        $region53: #{tpu_custom_call.1} parent=39 // pred_check
          %p323 = pneg %p322
        $region54: #{tpu_custom_call.1} parent=39 // pred_check_branch
          %325 = sbr.rel (%p323) target = $region56
        $region55: #{tpu_custom_call.1} parent=39 // pred_region
          %v326 = vld [vmem:[#allocation3] sm:$0xff]
          %v327 = vld [vmem:[#allocation3 + $0x8] sm:$0xff]
          %v328 = vld [vmem:[#allocation6] sm:$0xf]
          %v329 = vld [vmem:[#allocation6 + $0x4] sm:$0xf]
          %v330 = vld [vmem:[#allocation6 + $0x8] sm:$0xf]
          %v331 = vld [vmem:[#allocation6 + $0xc] sm:$0xf]
          %v332 = vld [vmem:[#allocation6 + $0x10] sm:$0xf]
          %v333 = vld [vmem:[#allocation6 + $0x14] sm:$0xf]
          %v334 = vld [vmem:[#allocation6 + $0x18] sm:$0xf]
          %v335 = vld [vmem:[#allocation6 + $0x1c] sm:$0xf]
          %v336 = vld [vmem:[#allocation6 + $0x20] sm:$0xf]
          %v337 = vld [vmem:[#allocation6 + $0x24] sm:$0xf]
          %v338 = vld [vmem:[#allocation6 + $0x28] sm:$0xf]
          %v339 = vld [vmem:[#allocation6 + $0x2c] sm:$0xf]
          %v340 = vld [vmem:[#allocation6 + $0x30] sm:$0xf]
          %v341 = vld [vmem:[#allocation6 + $0x34] sm:$0xf]
          %v342 = vld [vmem:[#allocation6 + $0x38] sm:$0xf]
          %v343 = vld [vmem:[#allocation6 + $0x3c] sm:$0xf]
          %v344 = vld [vmem:[#allocation6 + $0x40] sm:$0xf]
          %v345 = vld [vmem:[#allocation6 + $0x44] sm:$0xf]
          %v346 = vld [vmem:[#allocation6 + $0x48] sm:$0xf]
          %v347 = vld [vmem:[#allocation6 + $0x4c] sm:$0xf]
          %v348 = vld [vmem:[#allocation6 + $0x50] sm:$0xf]
          %v349 = vld [vmem:[#allocation6 + $0x54] sm:$0xf]
          %v350 = vld [vmem:[#allocation6 + $0x58] sm:$0xf]
          %v351 = vld [vmem:[#allocation6 + $0x5c] sm:$0xf]
          %v352 = vld [vmem:[#allocation6 + $0x60] sm:$0xf]
          %v353 = vld [vmem:[#allocation6 + $0x64] sm:$0xf]
          %v354 = vld [vmem:[#allocation6 + $0x68] sm:$0xf]
          %v355 = vld [vmem:[#allocation6 + $0x6c] sm:$0xf]
          %v356 = vld [vmem:[#allocation6 + $0x70] sm:$0xf]
          %v357 = vld [vmem:[#allocation6 + $0x74] sm:$0xf]
          %v358 = vld [vmem:[#allocation6 + $0x78] sm:$0xf]
          %v359 = vld [vmem:[#allocation6 + $0x7c] sm:$0xf]
          %v360 = vld [vmem:[#allocation6 + $0x80] sm:$0xf]
          %v361 = vld [vmem:[#allocation6 + $0x84] sm:$0xf]
          %v362 = vld [vmem:[#allocation6 + $0x88] sm:$0xf]
          %v363 = vld [vmem:[#allocation6 + $0x8c] sm:$0xf]
          %v364 = vld [vmem:[#allocation6 + $0x90] sm:$0xf]
          %v365 = vld [vmem:[#allocation6 + $0x94] sm:$0xf]
          %v366 = vld [vmem:[#allocation6 + $0x98] sm:$0xf]
          %v367 = vld [vmem:[#allocation6 + $0x9c] sm:$0xf]
          %v368 = vld [vmem:[#allocation6 + $0xa0] sm:$0xf]
          %v369 = vld [vmem:[#allocation6 + $0xa4] sm:$0xf]
          %v370 = vld [vmem:[#allocation6 + $0xa8] sm:$0xf]
          %v371 = vld [vmem:[#allocation6 + $0xac] sm:$0xf]
          %v372 = vld [vmem:[#allocation6 + $0xb0] sm:$0xf]
          %v373 = vld [vmem:[#allocation6 + $0xb4] sm:$0xf]
          %v374 = vld [vmem:[#allocation6 + $0xb8] sm:$0xf]
          %v375 = vld [vmem:[#allocation6 + $0xbc] sm:$0xf]
          %v376 = vld [vmem:[#allocation6 + $0xc0] sm:$0xf]
          %v377 = vld [vmem:[#allocation6 + $0xc4] sm:$0xf]
          %v378 = vld [vmem:[#allocation6 + $0xc8] sm:$0xf]
          %v379 = vld [vmem:[#allocation6 + $0xcc] sm:$0xf]
          %v380 = vld [vmem:[#allocation6 + $0xd0] sm:$0xf]
          %v381 = vld [vmem:[#allocation6 + $0xd4] sm:$0xf]
          %v382 = vld [vmem:[#allocation6 + $0xd8] sm:$0xf]
          %v383 = vld [vmem:[#allocation6 + $0xdc] sm:$0xf]
          %v384 = vld [vmem:[#allocation6 + $0xe0] sm:$0xf]
          %v385 = vld [vmem:[#allocation6 + $0xe4] sm:$0xf]
          %v386 = vld [vmem:[#allocation6 + $0xe8] sm:$0xf]
          %v387 = vld [vmem:[#allocation6 + $0xec] sm:$0xf]
          %v388 = vld [vmem:[#allocation6 + $0xf0] sm:$0xf]
          %v389 = vld [vmem:[#allocation6 + $0xf4] sm:$0xf]
          %v390 = vld [vmem:[#allocation6 + $0xf8] sm:$0xf]
          %v391 = vld [vmem:[#allocation6 + $0xfc] sm:$0xf]
          %v392 = vld [vmem:[%s2] sm:$0x1]
          %v394 = vlaneseq
          %v395 = vshrl.u32 %v394, 7
          %v396 = vsub.s32 0, %v395
          %v397 = vrot.slane %v392, %v396
          %v401 = vunpack.c.l.b16 %v326
          %v402 = vunpack.c.h.b16 %v326
          %v403 = vunpack.c.l.b16 %v327
          %v404 = vunpack.c.h.b16 %v327
          %v405 = vpack.c.b16 %v401, %v401
          %v406 = vpack.c.b16 %v402, %v402
          %v407 = vpack.c.b16 %v403, %v403
          %v408 = vpack.c.b16 %v404, %v404
          %v477 = vunpack.c.l.b16 %v328
          %v478 = vunpack.c.l.b16 %v329
          %v479 = vunpack.c.l.b16 %v330
          %v480 = vunpack.c.l.b16 %v331
          %v481 = vunpack.c.l.b16 %v332
          %v482 = vunpack.c.l.b16 %v333
          %v483 = vunpack.c.l.b16 %v334
          %v484 = vunpack.c.l.b16 %v335
          %v485 = vunpack.c.l.b16 %v336
          %v486 = vunpack.c.l.b16 %v337
          %v487 = vunpack.c.l.b16 %v338
          %v488 = vunpack.c.l.b16 %v339
          %v489 = vunpack.c.l.b16 %v340
          %v490 = vunpack.c.l.b16 %v341
          %v491 = vunpack.c.l.b16 %v342
          %v492 = vunpack.c.l.b16 %v343
          %v493 = vunpack.c.l.b16 %v344
          %v494 = vunpack.c.l.b16 %v345
          %v495 = vunpack.c.l.b16 %v346
          %v496 = vunpack.c.l.b16 %v347
          %v497 = vunpack.c.l.b16 %v348
          %v498 = vunpack.c.l.b16 %v349
          %v499 = vunpack.c.l.b16 %v350
          %v500 = vunpack.c.l.b16 %v351
          %v501 = vunpack.c.l.b16 %v352
          %v502 = vunpack.c.l.b16 %v353
          %v503 = vunpack.c.l.b16 %v354
          %v504 = vunpack.c.l.b16 %v355
          %v505 = vunpack.c.l.b16 %v356
          %v506 = vunpack.c.l.b16 %v357
          %v507 = vunpack.c.l.b16 %v358
          %v508 = vunpack.c.l.b16 %v359
          %v509 = vunpack.c.l.b16 %v360
          %v510 = vunpack.c.l.b16 %v361
          %v511 = vunpack.c.l.b16 %v362
          %v512 = vunpack.c.l.b16 %v363
          %v513 = vunpack.c.l.b16 %v364
          %v514 = vunpack.c.l.b16 %v365
          %v515 = vunpack.c.l.b16 %v366
          %v516 = vunpack.c.l.b16 %v367
          %v517 = vunpack.c.l.b16 %v368
          %v518 = vunpack.c.l.b16 %v369
          %v519 = vunpack.c.l.b16 %v370
          %v520 = vunpack.c.l.b16 %v371
          %v521 = vunpack.c.l.b16 %v372
          %v522 = vunpack.c.l.b16 %v373
          %v523 = vunpack.c.l.b16 %v374
          %v524 = vunpack.c.l.b16 %v375
          %v525 = vunpack.c.l.b16 %v376
          %v526 = vunpack.c.l.b16 %v377
          %v527 = vunpack.c.l.b16 %v378
          %v528 = vunpack.c.l.b16 %v379
          %v529 = vunpack.c.l.b16 %v380
          %v530 = vunpack.c.l.b16 %v381
          %v531 = vunpack.c.l.b16 %v382
          %v532 = vunpack.c.l.b16 %v383
          %v533 = vunpack.c.l.b16 %v384
          %v534 = vunpack.c.l.b16 %v385
          %v535 = vunpack.c.l.b16 %v386
          %v536 = vunpack.c.l.b16 %v387
          %v537 = vunpack.c.l.b16 %v388
          %v538 = vunpack.c.l.b16 %v389
          %v539 = vunpack.c.l.b16 %v390
          %v540 = vunpack.c.l.b16 %v391
          %v541 = vpack.c.b16 %v478, %v477
          %v542 = vpack.c.b16 %v480, %v479
          %v543 = vpack.c.b16 %v482, %v481
          %v544 = vpack.c.b16 %v484, %v483
          %v545 = vpack.c.b16 %v486, %v485
          %v546 = vpack.c.b16 %v488, %v487
          %v547 = vpack.c.b16 %v490, %v489
          %v548 = vpack.c.b16 %v492, %v491
          %v549 = vpack.c.b16 %v494, %v493
          %v550 = vpack.c.b16 %v496, %v495
          %v551 = vpack.c.b16 %v498, %v497
          %v552 = vpack.c.b16 %v500, %v499
          %v553 = vpack.c.b16 %v502, %v501
          %v554 = vpack.c.b16 %v504, %v503
          %v555 = vpack.c.b16 %v506, %v505
          %v556 = vpack.c.b16 %v508, %v507
          %v557 = vpack.c.b16 %v510, %v509
          %v558 = vpack.c.b16 %v512, %v511
          %v559 = vpack.c.b16 %v514, %v513
          %v560 = vpack.c.b16 %v516, %v515
          %v561 = vpack.c.b16 %v518, %v517
          %v562 = vpack.c.b16 %v520, %v519
          %v563 = vpack.c.b16 %v522, %v521
          %v564 = vpack.c.b16 %v524, %v523
          %v565 = vpack.c.b16 %v526, %v525
          %v566 = vpack.c.b16 %v528, %v527
          %v567 = vpack.c.b16 %v530, %v529
          %v568 = vpack.c.b16 %v532, %v531
          %v569 = vpack.c.b16 %v534, %v533
          %v570 = vpack.c.b16 %v536, %v535
          %v571 = vpack.c.b16 %v538, %v537
          %v572 = vpack.c.b16 %v540, %v539
          %605 = vmatprep.subr.bf16.mxu0 0
          %606 = vmatpush1.bf16.msra.mxu0 %v541
          %607 = vmatprep.subr.bf16.mxu0 0
          %608 = vmatpush1.bf16.msra.mxu0 %v542
          %609 = vmatprep.subr.bf16.mxu0 0
          %610 = vmatpush1.bf16.msra.mxu0 %v543
          %611 = vmatprep.subr.bf16.mxu0 0
          %612 = vmatpush1.bf16.msra.mxu0 %v544
          %613 = vmatprep.subr.bf16.mxu0 0
          %614 = vmatpush1.bf16.msra.mxu0 %v545
          %615 = vmatprep.subr.bf16.mxu0 0
          %616 = vmatpush1.bf16.msra.mxu0 %v546
          %617 = vmatprep.subr.bf16.mxu0 0
          %618 = vmatpush1.bf16.msra.mxu0 %v547
          %619 = vmatprep.subr.bf16.mxu0 0
          %620 = vmatpush1.bf16.msra.mxu0 %v548
          %621 = vmatprep.subr.bf16.mxu0 0
          %622 = vmatpush1.bf16.msra.mxu0 %v549
          %623 = vmatprep.subr.bf16.mxu0 0
          %624 = vmatpush1.bf16.msra.mxu0 %v550
          %625 = vmatprep.subr.bf16.mxu0 0
          %626 = vmatpush1.bf16.msra.mxu0 %v551
          %627 = vmatprep.subr.bf16.mxu0 0
          %628 = vmatpush1.bf16.msra.mxu0 %v552
          %629 = vmatprep.subr.bf16.mxu0 0
          %630 = vmatpush1.bf16.msra.mxu0 %v553
          %631 = vmatprep.subr.bf16.mxu0 0
          %632 = vmatpush1.bf16.msra.mxu0 %v554
          %633 = vmatprep.subr.bf16.mxu0 0
          %634 = vmatpush1.bf16.msra.mxu0 %v555
          %635 = vmatprep.subr.bf16.mxu0 0
          %636 = vmatpush1.bf16.msra.mxu0 %v556
          %637 = vmatprep.mubr.bf16.mxu0 %v406
          %638 = vmatmul.mubr.bf16.gmra.mrb[0].mxu0 %v405
          %v639 = vpop.f32.mrb[0].mxu0
          %v640 = vadd.f32 %v397, %v639
          %v641 = vpop.f32.mrb[0].mxu0
          %v642 = vpop.f32.mrb[0].mxu0
          %v643 = vpop.f32.mrb[0].mxu0
          %644 = vdwg.mxu0
          %645 = vmatprep.subr.bf16.mxu0 0
          %646 = vmatpush1.bf16.msra.mxu0 %v557
          %647 = vmatprep.subr.bf16.mxu0 0
          %648 = vmatpush1.bf16.msra.mxu0 %v558
          %649 = vmatprep.subr.bf16.mxu0 0
          %650 = vmatpush1.bf16.msra.mxu0 %v559
          %651 = vmatprep.subr.bf16.mxu0 0
          %652 = vmatpush1.bf16.msra.mxu0 %v560
          %653 = vmatprep.subr.bf16.mxu0 0
          %654 = vmatpush1.bf16.msra.mxu0 %v561
          %655 = vmatprep.subr.bf16.mxu0 0
          %656 = vmatpush1.bf16.msra.mxu0 %v562
          %657 = vmatprep.subr.bf16.mxu0 0
          %658 = vmatpush1.bf16.msra.mxu0 %v563
          %659 = vmatprep.subr.bf16.mxu0 0
          %660 = vmatpush1.bf16.msra.mxu0 %v564
          %661 = vmatprep.subr.bf16.mxu0 0
          %662 = vmatpush1.bf16.msra.mxu0 %v565
          %663 = vmatprep.subr.bf16.mxu0 0
          %664 = vmatpush1.bf16.msra.mxu0 %v566
          %665 = vmatprep.subr.bf16.mxu0 0
          %666 = vmatpush1.bf16.msra.mxu0 %v567
          %667 = vmatprep.subr.bf16.mxu0 0
          %668 = vmatpush1.bf16.msra.mxu0 %v568
          %669 = vmatprep.subr.bf16.mxu0 0
          %670 = vmatpush1.bf16.msra.mxu0 %v569
          %671 = vmatprep.subr.bf16.mxu0 0
          %672 = vmatpush1.bf16.msra.mxu0 %v570
          %673 = vmatprep.subr.bf16.mxu0 0
          %674 = vmatpush1.bf16.msra.mxu0 %v571
          %675 = vmatprep.subr.bf16.mxu0 0
          %676 = vmatpush1.bf16.msra.mxu0 %v572
          %677 = vmatprep.mubr.bf16.mxu0 %v408
          %678 = vmatmul.mubr.bf16.gmra.mrb[0].mxu0 %v407
          %v679 = vpop.f32.mrb[0].mxu0
          %v680 = vadd.f32 %v640, %v679
          %v681 = vpop.f32.mrb[0].mxu0
          %v682 = vpop.f32.mrb[0].mxu0
          %v683 = vpop.f32.mrb[0].mxu0
          %684 = vdwg.mxu0
          %vm685 = vcmp.gt.f32.partialorder %v680, 0.0
          %v686 = vmul.f32 %v680, 0.01
          %v687 = vsel %vm685, %v680, %v686
          %v688 = vpack.c.bf16 %v687, %v687
          %689 = vst [vmem:[#allocation2] sm:$0xf] %v688
        $region56: #{tpu_custom_call.1} parent=39 // pred_fallthru
          _
        %v690 = vld [vmem:[#allocation2] sm:$0xf]
        %v691 = vld [vmem:[%s278] sm:$0xf]
        %v692 = vld [vmem:[%s278 + $0x4] sm:$0xf]
        %v693 = vld [vmem:[%s278 + $0x8] sm:$0xf]
        %v694 = vld [vmem:[%s278 + $0xc] sm:$0xf]
        %v695 = vld [vmem:[%s278 + $0x10] sm:$0xf]
        %v696 = vld [vmem:[%s278 + $0x14] sm:$0xf]
        %v697 = vld [vmem:[%s278 + $0x18] sm:$0xf]
        %v698 = vld [vmem:[%s278 + $0x1c] sm:$0xf]
        %v699 = vld [vmem:[%s278 + $0x20] sm:$0xf]
        %v700 = vld [vmem:[%s278 + $0x24] sm:$0xf]
        %v701 = vld [vmem:[%s278 + $0x28] sm:$0xf]
        %v702 = vld [vmem:[%s278 + $0x2c] sm:$0xf]
        %v703 = vld [vmem:[%s278 + $0x30] sm:$0xf]
        %v704 = vld [vmem:[%s278 + $0x34] sm:$0xf]
        %v705 = vld [vmem:[%s278 + $0x38] sm:$0xf]
        %v706 = vld [vmem:[%s278 + $0x3c] sm:$0xf]
        %v707 = vld [vmem:[%s316] sm:$0x1]
        %v709 = vlaneseq
        %v710 = vshrl.u32 %v709, 7
        %v711 = vsub.s32 0, %v710
        %v712 = vrot.slane %v707, %v711
        %v730 = vunpack.c.l.b16 %v691
        %v731 = vunpack.c.l.b16 %v692
        %v732 = vunpack.c.l.b16 %v693
        %v733 = vunpack.c.l.b16 %v694
        %v734 = vunpack.c.l.b16 %v695
        %v735 = vunpack.c.l.b16 %v696
        %v736 = vunpack.c.l.b16 %v697
        %v737 = vunpack.c.l.b16 %v698
        %v738 = vunpack.c.l.b16 %v699
        %v739 = vunpack.c.l.b16 %v700
        %v740 = vunpack.c.l.b16 %v701
        %v741 = vunpack.c.l.b16 %v702
        %v742 = vunpack.c.l.b16 %v703
        %v743 = vunpack.c.l.b16 %v704
        %v744 = vunpack.c.l.b16 %v705
        %v745 = vunpack.c.l.b16 %v706
        %v746 = vpack.c.b16 %v731, %v730
        %v747 = vpack.c.b16 %v733, %v732
        %v748 = vpack.c.b16 %v735, %v734
        %v749 = vpack.c.b16 %v737, %v736
        %v750 = vpack.c.b16 %v739, %v738
        %v751 = vpack.c.b16 %v741, %v740
        %v752 = vpack.c.b16 %v743, %v742
        %v753 = vpack.c.b16 %v745, %v744
        %762 = vmatprep.subr.bf16.mxu0 0
        %763 = vmatpush1.bf16.msra.mxu0 %v746
        %764 = vmatprep.subr.bf16.mxu0 0
        %765 = vmatpush1.bf16.msra.mxu0 %v747
        %766 = vmatprep.subr.bf16.mxu0 0
        %767 = vmatpush1.bf16.msra.mxu0 %v748
        %768 = vmatprep.subr.bf16.mxu0 0
        %769 = vmatpush1.bf16.msra.mxu0 %v749
        %770 = vmatprep.subr.bf16.mxu0 0
        %771 = vmatpush1.bf16.msra.mxu0 %v750
        %772 = vmatprep.subr.bf16.mxu0 0
        %773 = vmatpush1.bf16.msra.mxu0 %v751
        %774 = vmatprep.subr.bf16.mxu0 0
        %775 = vmatpush1.bf16.msra.mxu0 %v752
        %776 = vmatprep.subr.bf16.mxu0 0
        %777 = vmatpush1.bf16.msra.mxu0 %v753
        %778 = vmatprep.subr.bf16.mxu0 0
        %779 = vmatpush1.bf16.msra.mxu0 0
        %780 = vmatprep.subr.bf16.mxu0 0
        %781 = vmatpush1.bf16.msra.mxu0 0
        %782 = vmatprep.subr.bf16.mxu0 0
        %783 = vmatpush1.bf16.msra.mxu0 0
        %784 = vmatprep.subr.bf16.mxu0 0
        %785 = vmatpush1.bf16.msra.mxu0 0
        %786 = vmatprep.subr.bf16.mxu0 0
        %787 = vmatpush1.bf16.msra.mxu0 0
        %788 = vmatprep.subr.bf16.mxu0 0
        %789 = vmatpush1.bf16.msra.mxu0 0
        %790 = vmatprep.subr.bf16.mxu0 0
        %791 = vmatpush1.bf16.msra.mxu0 0
        %792 = vmatprep.subr.bf16.mxu0 0
        %793 = vmatpush1.bf16.msra.mxu0 0
        %794 = vmatprep.mubr.bf16.mxu0 0
        %795 = vmatmul.mubr.bf16.gmra.mrb[0].mxu0 %v690
        %v796 = vpop.f32.mrb[0].mxu0
        %v797 = vadd.f32 %v712, %v796
        %v798 = vpop.f32.mrb[0].mxu0
        %v799 = vpop.f32.mrb[0].mxu0
        %v800 = vpop.f32.mrb[0].mxu0
        %801 = vdwg.mxu0
        %v802 = vtanh.pop %v797
        %803 = vst [vmem:[%s309] sm:$0xff] %v802
        %s804 = sand.u32 %s168, 1
        %s805 = scalar_lea.sflag [#allocation5], %s804
        %s806 = sand.u32 %s168, 1
        %s807 = smul.addr %s806, 8
        %s808 = scalar_lea.vmem [#allocation9], %s807
        // Predicated region
        $region57: #{tpu_custom_call.1} parent=39 // pred_check
          %p809 = pneg %p178
        $region58: #{tpu_custom_call.1} parent=39 // pred_check_branch
          %811 = sbr.rel (%p809) target = $region60
        $region59: #{tpu_custom_call.1} parent=39 // pred_region
          %s812 = smul.u32 %s25, 2
          %s813 = sadd.s32 %s812, %s26
          %s815 = ssub.s32 128, 128
          %816 = vsyncadd %s805, %s815
          %s817 = smul.addr %s813, 128
          %s818 = scalar_lea.hbm %s5, %s817
          %s820 = sshll.u32 %s808, 4
          %s821 = int_to_ptr.vmem [resolvable:$true] %s820
          %823 = dma.vmem_to_hbm [thread:$0]  %s821, 128, %s818, %s805
        $region60: #{tpu_custom_call.1} parent=39 // pred_fallthru
          _
      $region40: #{tpu_custom_call.1} parent=5 // pred_fallthru
        _
      %p824 = scmp.le.s32.totalorder 2, %s16
      // Predicated region
      $region61: #{tpu_custom_call.1} parent=5 // pred_check
        %p825 = pneg %p824
      $region62: #{tpu_custom_call.1} parent=5 // pred_check_branch
        %827 = sbr.rel (%p825) target = $region64
      $region63: #{tpu_custom_call.1} parent=5 // pred_region
        %s828 = ssub.s32 %s16, 2
        // Predicated region
        $region65: #{tpu_custom_call.1} parent=63 // pred_check
          %p829 = pneg %p184
        $region66: #{tpu_custom_call.1} parent=63 // pred_check_branch
          %831 = sbr.rel (%p829) target = $region68
        $region67: #{tpu_custom_call.1} parent=63 // pred_region
          %s832 = sand.u32 %s169, 1
          %s833 = scalar_lea.sflag [#allocation5], %s832
          %s834 = sand.u32 %s169, 1
          %s835 = smul.addr %s834, 8
          %s836 = scalar_lea.vmem [#allocation9], %s835
          %837 = dma.done %s833, 128
        $region68: #{tpu_custom_call.1} parent=63 // pred_fallthru
          _
      $region64: #{tpu_custom_call.1} parent=5 // pred_fallthru
        _
    $region6: #{tpu_custom_call.1} parent=1 // loop_footer
      %s20 = sadd.s32 1, %s16
    $region7: #{tpu_custom_call.1} parent=1 // loop_footer_branch
      %15 = sbr.rel target = $region3
    $region8: #{tpu_custom_call.1} parent=1 // loop_exit
      _
    %838 = vsyncpa [#allocation4], 1
    %s839 = scalar_lea.sflag [#allocation4], 1
    %840 = vsyncpa %s839, 1
    %841 = vsyncpa [#allocation7], 1
    %842 = vsyncpa [#allocation5], 1
    %s843 = scalar_lea.sflag [#allocation5], 1
    %844 = vsyncpa %s843, 1

</llo_original>
